<compile_context>
chip_gen: v5e
topology: v5e:2x2
jax: 0.10.0
libtpu: 0.0.40
codegen_flags: <defaults>
</compile_context>

<pallas_src>
import jax
import jax.numpy as jnp
from jax.experimental import pallas as pl
from jax.experimental.pallas import tpu as pltpu

HEIGHT = 26
WIDTH = 26
NUM_CLASSES = 5
IN_DIM = HEIGHT * WIDTH   # 676
H1 = 300
H2 = 100
DROP_P = 0.5              # F.dropout default, training=True

LANE = 128


def _round_up(n, m):
    return (n + m - 1) // m * m


# Lane-padded feature dims.
IN_P = _round_up(IN_DIM, LANE)         # 768
H1_P = _round_up(H1, LANE)             # 384
H2_P = _round_up(H2, LANE)             # 128
OUT_P = _round_up(NUM_CLASSES, LANE)   # 128


def ffnn_kernel(x_ref, mask_ref, w1_ref, b1_ref, w2_ref, b2_ref, w3_ref, b3_ref, o_ref):
    # ---- layer 1: Linear(676 -> 300) + ReLU (+ redundant clamp(min=0)) ----
    h1 = jnp.dot(x_ref[...], w1_ref[...], preferred_element_type=jnp.float32)
    h1 = jnp.maximum(h1 + b1_ref[...], 0.0)

    # ---- dropout(p=0.5, training=True): mask holds 0.0 (dropped) or 2.0 (kept) ----
    h1 = h1 * mask_ref[...]

    # ---- layer 2: Linear(300 -> 100) + ReLU ----
    h2 = jnp.dot(h1.astype(w2_ref.dtype), w2_ref[...], preferred_element_type=jnp.float32)
    h2 = jnp.maximum(h2 + b2_ref[...], 0.0)

    # ---- layer 3: Linear(100 -> 5) + ReLU ----
    h3 = jnp.dot(h2.astype(w3_ref.dtype), w3_ref[...], preferred_element_type=jnp.float32)
    o_ref[...] = jnp.maximum(h3 + b3_ref[...], 0.0).astype(o_ref.dtype)


def _prepare_params(params, compute_dtype):
    """Zero-pad weights/biases to lane-aligned shapes; weights in compute_dtype."""
    def pad_w(w, rows, cols):
        w = jnp.pad(w, ((0, rows - w.shape[0]), (0, cols - w.shape[1])))
        return w.astype(compute_dtype)

    def pad_b(b, cols):
        return jnp.pad(b, ((0, 0), (0, cols - b.shape[1]))).astype(jnp.float32)

    return {
        "w1": pad_w(params["w1"], IN_P, H1_P), "b1": pad_b(params["b1"], H1_P),
        "w2": pad_w(params["w2"], H1_P, H2_P), "b2": pad_b(params["b2"], H2_P),
        "w3": pad_w(params["w3"], H2_P, OUT_P), "b3": pad_b(params["b3"], OUT_P),
    }


def feed_forward_nn(x, params, dropout_key, *, compute_dtype=jnp.bfloat16, block_b=256):
    """x: [B, 676] float32. params: dict of unpadded weights/biases. Returns [B, 5] f32."""
    B = x.shape[0]
    p = _prepare_params(params, compute_dtype)

    # Batch tile: fill the MXU M dim when the batch is large; otherwise round
    # the whole (small) batch up to a sublane multiple and do one grid step.
    tb = block_b if B >= block_b else _round_up(B, 8)
    padded_b = _round_up(B, tb)

    # Zero-padded, bf16 activations (padded rows/cols contribute nothing).
    x_p = jnp.zeros((padded_b, IN_P), compute_dtype).at[:B, :IN_DIM].set(
        x.astype(compute_dtype))

    # Dropout scale mask in {0, 1/(1-p)} generated host-side (portable; the
    # in-kernel pltpu.prng_* path has no CPU/interpret lowering).
    keep = jax.random.bernoulli(dropout_key, 1.0 - DROP_P, (padded_b, H1_P))
    mask = keep.astype(jnp.float32) * jnp.float32(1.0 / (1.0 - DROP_P))

    grid = (padded_b // tb,)
    out = pl.pallas_call(
        ffnn_kernel,
        out_shape=jax.ShapeDtypeStruct((padded_b, OUT_P), jnp.float32),
        grid_spec=pl.GridSpec(
            grid=grid,
            in_specs=[
                pl.BlockSpec((tb, IN_P), lambda i: (i, 0)),      # x tile (pipelined)
                pl.BlockSpec((tb, H1_P), lambda i: (i, 0)),      # dropout mask tile
                pl.BlockSpec((IN_P, H1_P), lambda i: (0, 0)),    # w1 (resident)
                pl.BlockSpec((1, H1_P), lambda i: (0, 0)),       # b1
                pl.BlockSpec((H1_P, H2_P), lambda i: (0, 0)),    # w2
                pl.BlockSpec((1, H2_P), lambda i: (0, 0)),       # b2
                pl.BlockSpec((H2_P, OUT_P), lambda i: (0, 0)),   # w3
                pl.BlockSpec((1, OUT_P), lambda i: (0, 0)),      # b3
            ],
            out_specs=pl.BlockSpec((tb, OUT_P), lambda i: (i, 0)),
        ),
        compiler_params=pltpu.CompilerParams(
            dimension_semantics=("parallel",),
        ),
    )(x_p, mask, p["w1"], p["b1"], p["w2"], p["b2"], p["w3"], p["b3"])

    return out[:B, :NUM_CLASSES]


def init_params(key):
    """Deterministic init mimicking torch.nn.Linear: U(-1/sqrt(fan_in), 1/sqrt(fan_in))."""
    ks = jax.random.split(key, 6)

    def lin(kw, kb, fan_in, fan_out):
        bound = 1.0 / jnp.sqrt(fan_in)
        w = jax.random.uniform(kw, (fan_in, fan_out), jnp.float32, -bound, bound)
        b = jax.random.uniform(kb, (1, fan_out), jnp.float32, -bound, bound)
        return w, b

    w1, b1 = lin(ks[0], ks[1], IN_DIM, H1)
    w2, b2 = lin(ks[2], ks[3], H1, H2)
    w3, b3 = lin(ks[4], ks[5], H2, NUM_CLASSES)
    return {"w1": w1, "b1": b1, "w2": w2, "b2": b2, "w3": w3, "b3": b3}


if __name__ == "__main__":
    key = jax.random.PRNGKey(0)
    k_params, k_x, k_drop = jax.random.split(key, 3)
    params = init_params(k_params)

    B = 8
    x = jax.random.normal(k_x, (B, IN_DIM), jnp.float32)

    y = feed_forward_nn(x, params, k_drop)
    y = jax.block_until_ready(y)

    assert y.shape == (B, NUM_CLASSES)
    assert y.dtype == jnp.float32
    assert bool(jnp.all(y >= 0.0))  # final ReLU/clamp(min=0)
    print("KERNEL_OK")
</pallas_src>

<mosaic_0001>
module attributes {stable_mosaic.version = 11 : i64} {
  func.func @ffnn_kernel(%arg0: i32, %arg1: memref<8x768xbf16, #tpu.memory_space<vmem>>, %arg2: memref<8x384xf32, #tpu.memory_space<vmem>>, %arg3: memref<768x384xbf16, #tpu.memory_space<vmem>>, %arg4: memref<1x384xf32, #tpu.memory_space<vmem>>, %arg5: memref<384x128xbf16, #tpu.memory_space<vmem>>, %arg6: memref<1x128xf32, #tpu.memory_space<vmem>>, %arg7: memref<128x128xbf16, #tpu.memory_space<vmem>>, %arg8: memref<1x128xf32, #tpu.memory_space<vmem>>, %arg9: memref<8x128xf32, #tpu.memory_space<vmem>>) attributes {dimension_semantics = [#tpu.dimension_semantics<parallel>], iteration_bounds = array<i64: 1>, scalar_prefetch = 0 : i64, scratch_operands = 0 : i64, tpu.core_type = #tpu.core_type<tc>, window_params = [{transform_indices = @transform_0, window_bounds = array<i64: 8, 768>}, {transform_indices = @transform_1, window_bounds = array<i64: 8, 384>}, {pipeline_mode = #tpu.pipeline_mode<synchronous>, transform_indices = @transform_2, window_bounds = array<i64: 768, 384>}, {pipeline_mode = #tpu.pipeline_mode<synchronous>, transform_indices = @transform_3, window_bounds = array<i64: 1, 384>}, {pipeline_mode = #tpu.pipeline_mode<synchronous>, transform_indices = @transform_4, window_bounds = array<i64: 384, 128>}, {pipeline_mode = #tpu.pipeline_mode<synchronous>, transform_indices = @transform_5, window_bounds = array<i64: 1, 128>}, {pipeline_mode = #tpu.pipeline_mode<synchronous>, transform_indices = @transform_6, window_bounds = array<i64: 128, 128>}, {pipeline_mode = #tpu.pipeline_mode<synchronous>, transform_indices = @transform_7, window_bounds = array<i64: 1, 128>}, {transform_indices = @transform_8, window_bounds = array<i64: 8, 128>}]} {
    %c0 = arith.constant 0 : index
    %c0_0 = arith.constant 0 : index
    %0 = vector.load %arg1[%c0, %c0_0] : memref<8x768xbf16, #tpu.memory_space<vmem>>, vector<8x768xbf16>
    %c0_1 = arith.constant 0 : index
    %c0_2 = arith.constant 0 : index
    %1 = vector.load %arg3[%c0_1, %c0_2] : memref<768x384xbf16, #tpu.memory_space<vmem>>, vector<768x384xbf16>
    %cst = arith.constant dense<0.000000e+00> : vector<8x384xf32>
    %2 = tpu.matmul %0, %1, %cst {dimension_numbers = #tpu.dot_dimension_numbers<[1], [0], [0], [1], [0, 0, 1, 1], [], []>} : vector<8x768xbf16>, vector<768x384xbf16>, vector<8x384xf32> -> vector<8x384xf32>
    %c0_3 = arith.constant 0 : index
    %c0_4 = arith.constant 0 : index
    %3 = vector.load %arg4[%c0_3, %c0_4] : memref<1x384xf32, #tpu.memory_space<vmem>>, vector<1x384xf32>
    %4 = vector.broadcast %3 : vector<1x384xf32> to vector<8x384xf32>
    %5 = arith.addf %2, %4 : vector<8x384xf32>
    %cst_5 = arith.constant 0.000000e+00 : f32
    %6 = vector.broadcast %cst_5 : f32 to vector<8x384xf32>
    %7 = arith.maximumf %5, %6 : vector<8x384xf32>
    %c0_6 = arith.constant 0 : index
    %c0_7 = arith.constant 0 : index
    %8 = vector.load %arg2[%c0_6, %c0_7] : memref<8x384xf32, #tpu.memory_space<vmem>>, vector<8x384xf32>
    %9 = arith.mulf %7, %8 : vector<8x384xf32>
    %10 = arith.truncf %9 : vector<8x384xf32> to vector<8x384xbf16>
    %c0_8 = arith.constant 0 : index
    %c0_9 = arith.constant 0 : index
    %11 = vector.load %arg5[%c0_8, %c0_9] : memref<384x128xbf16, #tpu.memory_space<vmem>>, vector<384x128xbf16>
    %cst_10 = arith.constant dense<0.000000e+00> : vector<8x128xf32>
    %12 = tpu.matmul %10, %11, %cst_10 {dimension_numbers = #tpu.dot_dimension_numbers<[1], [0], [0], [1], [0, 0, 1, 1], [], []>} : vector<8x384xbf16>, vector<384x128xbf16>, vector<8x128xf32> -> vector<8x128xf32>
    %c0_11 = arith.constant 0 : index
    %c0_12 = arith.constant 0 : index
    %13 = vector.load %arg6[%c0_11, %c0_12] : memref<1x128xf32, #tpu.memory_space<vmem>>, vector<1x128xf32>
    %14 = vector.broadcast %13 : vector<1x128xf32> to vector<8x128xf32>
    %15 = arith.addf %12, %14 : vector<8x128xf32>
    %cst_13 = arith.constant 0.000000e+00 : f32
    %16 = vector.broadcast %cst_13 : f32 to vector<8x128xf32>
    %17 = arith.maximumf %15, %16 : vector<8x128xf32>
    %18 = arith.truncf %17 : vector<8x128xf32> to vector<8x128xbf16>
    %c0_14 = arith.constant 0 : index
    %c0_15 = arith.constant 0 : index
    %19 = vector.load %arg7[%c0_14, %c0_15] : memref<128x128xbf16, #tpu.memory_space<vmem>>, vector<128x128xbf16>
    %cst_16 = arith.constant dense<0.000000e+00> : vector<8x128xf32>
    %20 = tpu.matmul %18, %19, %cst_16 {dimension_numbers = #tpu.dot_dimension_numbers<[1], [0], [0], [1], [0, 0, 1, 1], [], []>} : vector<8x128xbf16>, vector<128x128xbf16>, vector<8x128xf32> -> vector<8x128xf32>
    %c0_17 = arith.constant 0 : index
    %c0_18 = arith.constant 0 : index
    %21 = vector.load %arg8[%c0_17, %c0_18] : memref<1x128xf32, #tpu.memory_space<vmem>>, vector<1x128xf32>
    %22 = vector.broadcast %21 : vector<1x128xf32> to vector<8x128xf32>
    %23 = arith.addf %20, %22 : vector<8x128xf32>
    %cst_19 = arith.constant 0.000000e+00 : f32
    %24 = vector.broadcast %cst_19 : f32 to vector<8x128xf32>
    %25 = arith.maximumf %23, %24 : vector<8x128xf32>
    %c0_20 = arith.constant 0 : index
    %c0_21 = arith.constant 0 : index
    %26 = vector.load %arg9[%c0_20, %c0_21] : memref<8x128xf32, #tpu.memory_space<vmem>>, vector<8x128xf32>
    tpu.vector_store %arg9[%c0_20, %c0_21], %25 {strides = array<i32>} : memref<8x128xf32, #tpu.memory_space<vmem>>, vector<8x128xf32>,
    return
  }
  func.func @transform_0(%arg0: i32) -> (i32, i32) {
    %c0_i32 = arith.constant 0 : i32
    %c0_i32_0 = arith.constant 0 : i32
    return %arg0, %c0_i32 : i32, i32
  }
  func.func @transform_1(%arg0: i32) -> (i32, i32) {
    %c0_i32 = arith.constant 0 : i32
    %c0_i32_0 = arith.constant 0 : i32
    return %arg0, %c0_i32 : i32, i32
  }
  func.func @transform_2(%arg0: i32) -> (i32, i32) {
    %c0_i32 = arith.constant 0 : i32
    %c0_i32_0 = arith.constant 0 : i32
    %c0_i32_1 = arith.constant 0 : i32
    return %c0_i32, %c0_i32_0 : i32, i32
  }
  func.func @transform_3(%arg0: i32) -> (i32, i32) {
    %c0_i32 = arith.constant 0 : i32
    %c0_i32_0 = arith.constant 0 : i32
    %c0_i32_1 = arith.constant 0 : i32
    return %c0_i32, %c0_i32_0 : i32, i32
  }
  func.func @transform_4(%arg0: i32) -> (i32, i32) {
    %c0_i32 = arith.constant 0 : i32
    %c0_i32_0 = arith.constant 0 : i32
    %c0_i32_1 = arith.constant 0 : i32
    return %c0_i32, %c0_i32_0 : i32, i32
  }
  func.func @transform_5(%arg0: i32) -> (i32, i32) {
    %c0_i32 = arith.constant 0 : i32
    %c0_i32_0 = arith.constant 0 : i32
    %c0_i32_1 = arith.constant 0 : i32
    return %c0_i32, %c0_i32_0 : i32, i32
  }
  func.func @transform_6(%arg0: i32) -> (i32, i32) {
    %c0_i32 = arith.constant 0 : i32
    %c0_i32_0 = arith.constant 0 : i32
    %c0_i32_1 = arith.constant 0 : i32
    return %c0_i32, %c0_i32_0 : i32, i32
  }
  func.func @transform_7(%arg0: i32) -> (i32, i32) {
    %c0_i32 = arith.constant 0 : i32
    %c0_i32_0 = arith.constant 0 : i32
    %c0_i32_1 = arith.constant 0 : i32
    return %c0_i32, %c0_i32_0 : i32, i32
  }
  func.func @transform_8(%arg0: i32) -> (i32, i32) {
    %c0_i32 = arith.constant 0 : i32
    %c0_i32_0 = arith.constant 0 : i32
    return %arg0, %c0_i32 : i32, i32
  }
}

</mosaic_0001>

<llo_original>
// kernel: tpu_custom_call.1
$region0: #{tpu_custom_call.1}
  #allocation0 [shape = 'u32[]', space=smem, size = 0x4, offset = 0x4, fixed_abs, tag = 'smem constant byte address 0x4 - core index']
  #allocation1 [shape = 'u32[72,128]{1,0:T(1,128)}', space=vmem, size = 0x9000, scoped, tag = 'internal scratch']
  %s0 = inlined_call_operand.hbm [shape: bf16[8,768], index: 0, kind: input, shape index: {}]
  %s1 = inlined_call_operand.hbm [shape: f32[8,384], index: 1, kind: input, shape index: {}]
  %s2 = inlined_call_operand.hbm [shape: bf16[768,384], index: 2, kind: input, shape index: {}]
  %s3 = inlined_call_operand.hbm [shape: f32[1,384], index: 3, kind: input, shape index: {}]
  %s4 = inlined_call_operand.hbm [shape: bf16[384,128], index: 4, kind: input, shape index: {}]
  %s5 = inlined_call_operand.vmem [shape: f32[1,128], index: 5, kind: input, shape index: {}]
  %s6 = inlined_call_operand.hbm [shape: bf16[128,128], index: 6, kind: input, shape index: {}]
  %s7 = inlined_call_operand.vmem [shape: f32[1,128], index: 7, kind: input, shape index: {}]
  %s8 = inlined_call_operand.hbm [shape: f32[8,128], index: 8, kind: output, shape index: {}]
  %s9 = sld [smem:[#allocation0]]
  $region66: #{tpu_custom_call.1} parent=0
    _
  %s11 = ssub.s32 1, %s9
  %s12 = scalar_select 0, %s11, %s9
  $region1: #{tpu_custom_call.1} parent=0
    #allocation2 [shape = 'u8[12288]{0}', space=vmem, size = 0x3000, scoped, tag = 'input window, operand 0, single buffered']
    #allocation3 [shape = 's32[1]{0}', space=sflag, size = 0x4, scoped, tag = 'scoped memory for tpu_custom_call.1']
    #allocation4 [shape = 's32[1]{0}', space=sflag, size = 0x4, scoped, tag = 'scoped memory for tpu_custom_call.1']
    #allocation5 [shape = 'u8[12288]{0}', space=vmem, size = 0x3000, scoped, tag = 'input window, operand 1, single buffered']
    #allocation6 [shape = 's32[1]{0}', space=sflag, size = 0x4, scoped, tag = 'scoped memory for tpu_custom_call.1']
    #allocation7 [shape = 'u8[589824]{0}', space=vmem, size = 0x90000, scoped, tag = 'input window, operand 2, single buffered']
    #allocation8 [shape = 'u8[1536]{0}', space=vmem, size = 0x800, scoped, tag = 'input window, operand 3, single buffered']
    #allocation9 [shape = 's32[1]{0}', space=sflag, size = 0x4, scoped, tag = 'scoped memory for tpu_custom_call.1']
    #allocation10 [shape = 'u8[98304]{0}', space=vmem, size = 0x18000, scoped, tag = 'input window, operand 4, single buffered']
    #allocation11 [shape = 'u8[32768]{0}', space=vmem, size = 0x8000, scoped, tag = 'input window, operand 6, single buffered']
    #allocation12 [shape = 's32[1]{0}', space=sflag, size = 0x4, scoped, tag = 'scoped memory for tpu_custom_call.1']
    #allocation13 [shape = 'u8[4096]{0}', space=vmem, size = 0x1000, scoped, tag = 'output window, operand 0, single buffered']
    %13 = vsyncpa [#allocation3], 0
    %14 = vsyncpa [#allocation6], 0
    %15 = vsyncpa [#allocation9], 0
    %16 = vsyncpa [#allocation12], 0
    %17 = vsyncpa [#allocation4], 0
    // Predicated region
    $region2: #{tpu_custom_call.1} parent=1 // pred_check
      _
    $region3: #{tpu_custom_call.1} parent=1 // pred_check_branch
      %19 = sbr.rel (0) target = $region5
    $region4: #{tpu_custom_call.1} parent=1 // pred_region
      %21 = vsyncadd [#allocation3], 0
      %s23 = sshll.u32 %s0, 4
      %s24 = int_to_ptr.hbm [resolvable:$true] %s23
      %s25 = sshll.u32 [#allocation2], 4
      %s26 = int_to_ptr.vmem [resolvable:$true] %s25
      %28 = dma.hbm_to_vmem [thread:$0]  %s24, 384, %s26, [#allocation3]
    $region5: #{tpu_custom_call.1} parent=1 // pred_fallthru
      _
    // Predicated region
    $region6: #{tpu_custom_call.1} parent=1 // pred_check
      _
    $region7: #{tpu_custom_call.1} parent=1 // pred_check_branch
      %30 = sbr.rel (0) target = $region9
    $region8: #{tpu_custom_call.1} parent=1 // pred_region
      %32 = vsyncadd [#allocation6], 0
      %s34 = sshll.u32 %s1, 4
      %s35 = int_to_ptr.hbm [resolvable:$true] %s34
      %s36 = sshll.u32 [#allocation5], 4
      %s37 = int_to_ptr.vmem [resolvable:$true] %s36
      %39 = dma.hbm_to_vmem [thread:$0]  %s35, 384, %s37, [#allocation6]
    $region9: #{tpu_custom_call.1} parent=1 // pred_fallthru
      _
    // Predicated region
    $region10: #{tpu_custom_call.1} parent=1 // pred_check
      _
    $region11: #{tpu_custom_call.1} parent=1 // pred_check_branch
      %41 = sbr.rel (0) target = $region13
    $region12: #{tpu_custom_call.1} parent=1 // pred_region
      %43 = vsyncadd [#allocation6], 0
      %s44 = sshll.u32 %s2, 4
      %s45 = int_to_ptr.hbm [resolvable:$true] %s44
      %s46 = sshll.u32 [#allocation7], 4
      %s47 = int_to_ptr.vmem [resolvable:$true] %s46
      %52 = dma.hbm_to_vmem [thread:$0]  %s45, 18432, %s47, [#allocation6], 192, 192, 12
    $region13: #{tpu_custom_call.1} parent=1 // pred_fallthru
      _
    // Predicated region
    $region14: #{tpu_custom_call.1} parent=1 // pred_check
      _
    $region15: #{tpu_custom_call.1} parent=1 // pred_check_branch
      %54 = sbr.rel (0) target = $region17
    $region16: #{tpu_custom_call.1} parent=1 // pred_region
      %56 = vsyncadd [#allocation9], 0
      %s58 = sshll.u32 %s3, 4
      %s59 = int_to_ptr.hbm [resolvable:$true] %s58
      %s60 = sshll.u32 [#allocation8], 4
      %s61 = int_to_ptr.vmem [resolvable:$true] %s60
      %63 = dma.hbm_to_vmem [thread:$0]  %s59, 48, %s61, [#allocation9]
    $region17: #{tpu_custom_call.1} parent=1 // pred_fallthru
      _
    // Predicated region
    $region18: #{tpu_custom_call.1} parent=1 // pred_check
      _
    $region19: #{tpu_custom_call.1} parent=1 // pred_check_branch
      %65 = sbr.rel (0) target = $region21
    $region20: #{tpu_custom_call.1} parent=1 // pred_region
      %67 = vsyncadd [#allocation9], 0
      %s68 = sshll.u32 %s4, 4
      %s69 = int_to_ptr.hbm [resolvable:$true] %s68
      %s70 = sshll.u32 [#allocation10], 4
      %s71 = int_to_ptr.vmem [resolvable:$true] %s70
      %76 = dma.hbm_to_vmem [thread:$0]  %s69, 3072, %s71, [#allocation9], 64, 64, 4
    $region21: #{tpu_custom_call.1} parent=1 // pred_fallthru
      _
    // Predicated region
    $region22: #{tpu_custom_call.1} parent=1 // pred_check
      _
    $region23: #{tpu_custom_call.1} parent=1 // pred_check_branch
      %78 = sbr.rel (0) target = $region25
    $region24: #{tpu_custom_call.1} parent=1 // pred_region
      _
    $region25: #{tpu_custom_call.1} parent=1 // pred_fallthru
      _
    // Predicated region
    $region26: #{tpu_custom_call.1} parent=1 // pred_check
      _
    $region27: #{tpu_custom_call.1} parent=1 // pred_check_branch
      %80 = sbr.rel (0) target = $region29
    $region28: #{tpu_custom_call.1} parent=1 // pred_region
      %82 = vsyncadd [#allocation12], 0
      %s83 = sshll.u32 %s6, 4
      %s84 = int_to_ptr.hbm [resolvable:$true] %s83
      %s85 = sshll.u32 [#allocation11], 4
      %s86 = int_to_ptr.vmem [resolvable:$true] %s85
      %91 = dma.hbm_to_vmem [thread:$0]  %s84, 1024, %s86, [#allocation12], 64, 64, 4
    $region29: #{tpu_custom_call.1} parent=1 // pred_fallthru
      _
    // Predicated region
    $region30: #{tpu_custom_call.1} parent=1 // pred_check
      _
    $region31: #{tpu_custom_call.1} parent=1 // pred_check_branch
      %93 = sbr.rel (0) target = $region33
    $region32: #{tpu_custom_call.1} parent=1 // pred_region
      _
    $region33: #{tpu_custom_call.1} parent=1 // pred_fallthru
      _
    // Predicated region
    $region34: #{tpu_custom_call.1} parent=1 // pred_check
      _
    $region35: #{tpu_custom_call.1} parent=1 // pred_check_branch
      %95 = sbr.rel (0) target = $region37
    $region36: #{tpu_custom_call.1} parent=1 // pred_region
      %97 = dma.done [#allocation3], 384
    $region37: #{tpu_custom_call.1} parent=1 // pred_fallthru
      _
    // Predicated region
    $region38: #{tpu_custom_call.1} parent=1 // pred_check
      _
    $region39: #{tpu_custom_call.1} parent=1 // pred_check_branch
      %99 = sbr.rel (0) target = $region41
    $region40: #{tpu_custom_call.1} parent=1 // pred_region
      %101 = dma.done [#allocation6], 384
    $region41: #{tpu_custom_call.1} parent=1 // pred_fallthru
      _
    // Predicated region
    $region42: #{tpu_custom_call.1} parent=1 // pred_check
      _
    $region43: #{tpu_custom_call.1} parent=1 // pred_check_branch
      %103 = sbr.rel (0) target = $region45
    $region44: #{tpu_custom_call.1} parent=1 // pred_region
      %105 = dma.done [#allocation6], 18432
    $region45: #{tpu_custom_call.1} parent=1 // pred_fallthru
      _
    // Predicated region
    $region46: #{tpu_custom_call.1} parent=1 // pred_check
      _
    $region47: #{tpu_custom_call.1} parent=1 // pred_check_branch
      %107 = sbr.rel (0) target = $region49
    $region48: #{tpu_custom_call.1} parent=1 // pred_region
      %109 = dma.done [#allocation9], 48
    $region49: #{tpu_custom_call.1} parent=1 // pred_fallthru
      _
    // Predicated region
    $region50: #{tpu_custom_call.1} parent=1 // pred_check
      _
    $region51: #{tpu_custom_call.1} parent=1 // pred_check_branch
      %111 = sbr.rel (0) target = $region53
    $region52: #{tpu_custom_call.1} parent=1 // pred_region
      %113 = dma.done [#allocation9], 3072
    $region53: #{tpu_custom_call.1} parent=1 // pred_fallthru
      _
    // Predicated region
    $region54: #{tpu_custom_call.1} parent=1 // pred_check
      _
    $region55: #{tpu_custom_call.1} parent=1 // pred_check_branch
      %115 = sbr.rel (0) target = $region57
    $region56: #{tpu_custom_call.1} parent=1 // pred_region
      %117 = dma.done [#allocation12], 1024
    $region57: #{tpu_custom_call.1} parent=1 // pred_fallthru
      _
    %v118 = vld [vmem:[#allocation2] sm:$0xff]
    %v119 = vld [vmem:[#allocation2 + $0x8] sm:$0xff]
    %v120 = vld [vmem:[#allocation2 + $0x10] sm:$0xff]
    %v121 = vld [vmem:[#allocation7] sm:$0xff]
    %v122 = vld [vmem:[#allocation7 + $0x8] sm:$0xf]
    %v123 = vld [vmem:[#allocation7 + $0xc] sm:$0xff]
    %v124 = vld [vmem:[#allocation7 + $0x14] sm:$0xf]
    %v125 = vld [vmem:[#allocation7 + $0x18] sm:$0xff]
    %v126 = vld [vmem:[#allocation7 + $0x20] sm:$0xf]
    %v127 = vld [vmem:[#allocation7 + $0x24] sm:$0xff]
    %v128 = vld [vmem:[#allocation7 + $0x2c] sm:$0xf]
    %v129 = vld [vmem:[#allocation7 + $0x30] sm:$0xff]
    %v130 = vld [vmem:[#allocation7 + $0x38] sm:$0xf]
    %v131 = vld [vmem:[#allocation7 + $0x3c] sm:$0xff]
    %v132 = vld [vmem:[#allocation7 + $0x44] sm:$0xf]
    %v133 = vld [vmem:[#allocation7 + $0x48] sm:$0xff]
    %v134 = vld [vmem:[#allocation7 + $0x50] sm:$0xf]
    %v135 = vld [vmem:[#allocation7 + $0x54] sm:$0xff]
    %v136 = vld [vmem:[#allocation7 + $0x5c] sm:$0xf]
    %v137 = vld [vmem:[#allocation7 + $0x60] sm:$0xff]
    %v138 = vld [vmem:[#allocation7 + $0x68] sm:$0xf]
    %v139 = vld [vmem:[#allocation7 + $0x6c] sm:$0xff]
    %v140 = vld [vmem:[#allocation7 + $0x74] sm:$0xf]
    %v141 = vld [vmem:[#allocation7 + $0x78] sm:$0xff]
    %v142 = vld [vmem:[#allocation7 + $0x80] sm:$0xf]
    %v143 = vld [vmem:[#allocation7 + $0x84] sm:$0xff]
    %v144 = vld [vmem:[#allocation7 + $0x8c] sm:$0xf]
    %v145 = vld [vmem:[#allocation7 + $0x90] sm:$0xff]
    %v146 = vld [vmem:[#allocation7 + $0x98] sm:$0xf]
    %v147 = vld [vmem:[#allocation7 + $0x9c] sm:$0xff]
    %v148 = vld [vmem:[#allocation7 + $0xa4] sm:$0xf]
    %v149 = vld [vmem:[#allocation7 + $0xa8] sm:$0xff]
    %v150 = vld [vmem:[#allocation7 + $0xb0] sm:$0xf]
    %v151 = vld [vmem:[#allocation7 + $0xb4] sm:$0xff]
    %v152 = vld [vmem:[#allocation7 + $0xbc] sm:$0xf]
    %v153 = vld [vmem:[#allocation7 + $0xc0] sm:$0xff]
    %v154 = vld [vmem:[#allocation7 + $0xc8] sm:$0xf]
    %v155 = vld [vmem:[#allocation7 + $0xcc] sm:$0xff]
    %v156 = vld [vmem:[#allocation7 + $0xd4] sm:$0xf]
    %v157 = vld [vmem:[#allocation7 + $0xd8] sm:$0xff]
    %v158 = vld [vmem:[#allocation7 + $0xe0] sm:$0xf]
    %v159 = vld [vmem:[#allocation7 + $0xe4] sm:$0xff]
    %v160 = vld [vmem:[#allocation7 + $0xec] sm:$0xf]
    %v161 = vld [vmem:[#allocation7 + $0xf0] sm:$0xff]
    %v162 = vld [vmem:[#allocation7 + $0xf8] sm:$0xf]
    %v163 = vld [vmem:[#allocation7 + $0xfc] sm:$0xff]
    %v164 = vld [vmem:[#allocation7 + $0x104] sm:$0xf]
    %v165 = vld [vmem:[#allocation7 + $0x108] sm:$0xff]
    %v166 = vld [vmem:[#allocation7 + $0x110] sm:$0xf]
    %v167 = vld [vmem:[#allocation7 + $0x114] sm:$0xff]
    %v168 = vld [vmem:[#allocation7 + $0x11c] sm:$0xf]
    %v169 = vld [vmem:[#allocation7 + $0x120] sm:$0xff]
    %v170 = vld [vmem:[#allocation7 + $0x128] sm:$0xf]
    %v171 = vld [vmem:[#allocation7 + $0x12c] sm:$0xff]
    %v172 = vld [vmem:[#allocation7 + $0x134] sm:$0xf]
    %v173 = vld [vmem:[#allocation7 + $0x138] sm:$0xff]
    %v174 = vld [vmem:[#allocation7 + $0x140] sm:$0xf]
    %v175 = vld [vmem:[#allocation7 + $0x144] sm:$0xff]
    %v176 = vld [vmem:[#allocation7 + $0x14c] sm:$0xf]
    %v177 = vld [vmem:[#allocation7 + $0x150] sm:$0xff]
    %v178 = vld [vmem:[#allocation7 + $0x158] sm:$0xf]
    %v179 = vld [vmem:[#allocation7 + $0x15c] sm:$0xff]
    %v180 = vld [vmem:[#allocation7 + $0x164] sm:$0xf]
    %v181 = vld [vmem:[#allocation7 + $0x168] sm:$0xff]
    %v182 = vld [vmem:[#allocation7 + $0x170] sm:$0xf]
    %v183 = vld [vmem:[#allocation7 + $0x174] sm:$0xff]
    %v184 = vld [vmem:[#allocation7 + $0x17c] sm:$0xf]
    %v185 = vld [vmem:[#allocation7 + $0x180] sm:$0xff]
    %v186 = vld [vmem:[#allocation7 + $0x188] sm:$0xf]
    %v187 = vld [vmem:[#allocation7 + $0x18c] sm:$0xff]
    %v188 = vld [vmem:[#allocation7 + $0x194] sm:$0xf]
    %v189 = vld [vmem:[#allocation7 + $0x198] sm:$0xff]
    %v190 = vld [vmem:[#allocation7 + $0x1a0] sm:$0xf]
    %v191 = vld [vmem:[#allocation7 + $0x1a4] sm:$0xff]
    %v192 = vld [vmem:[#allocation7 + $0x1ac] sm:$0xf]
    %v193 = vld [vmem:[#allocation7 + $0x1b0] sm:$0xff]
    %v194 = vld [vmem:[#allocation7 + $0x1b8] sm:$0xf]
    %v195 = vld [vmem:[#allocation7 + $0x1bc] sm:$0xff]
    %v196 = vld [vmem:[#allocation7 + $0x1c4] sm:$0xf]
    %v197 = vld [vmem:[#allocation7 + $0x1c8] sm:$0xff]
    %v198 = vld [vmem:[#allocation7 + $0x1d0] sm:$0xf]
    %v199 = vld [vmem:[#allocation7 + $0x1d4] sm:$0xff]
    %v200 = vld [vmem:[#allocation7 + $0x1dc] sm:$0xf]
    %v201 = vld [vmem:[#allocation7 + $0x1e0] sm:$0xff]
    %v202 = vld [vmem:[#allocation7 + $0x1e8] sm:$0xf]
    %v203 = vld [vmem:[#allocation7 + $0x1ec] sm:$0xff]
    %v204 = vld [vmem:[#allocation7 + $0x1f4] sm:$0xf]
    %v205 = vld [vmem:[#allocation7 + $0x1f8] sm:$0xff]
    %v206 = vld [vmem:[#allocation7 + $0x200] sm:$0xf]
    %v207 = vld [vmem:[#allocation7 + $0x204] sm:$0xff]
    %v208 = vld [vmem:[#allocation7 + $0x20c] sm:$0xf]
    %v209 = vld [vmem:[#allocation7 + $0x210] sm:$0xff]
    %v210 = vld [vmem:[#allocation7 + $0x218] sm:$0xf]
    %v211 = vld [vmem:[#allocation7 + $0x21c] sm:$0xff]
    %v212 = vld [vmem:[#allocation7 + $0x224] sm:$0xf]
    %v213 = vld [vmem:[#allocation7 + $0x228] sm:$0xff]
    %v214 = vld [vmem:[#allocation7 + $0x230] sm:$0xf]
    %v215 = vld [vmem:[#allocation7 + $0x234] sm:$0xff]
    %v216 = vld [vmem:[#allocation7 + $0x23c] sm:$0xf]
    %v217 = vld [vmem:[#allocation7 + $0x240] sm:$0xff]
    %v218 = vld [vmem:[#allocation7 + $0x248] sm:$0xf]
    %v219 = vld [vmem:[#allocation7 + $0x24c] sm:$0xff]
    %v220 = vld [vmem:[#allocation7 + $0x254] sm:$0xf]
    %v221 = vld [vmem:[#allocation7 + $0x258] sm:$0xff]
    %v222 = vld [vmem:[#allocation7 + $0x260] sm:$0xf]
    %v223 = vld [vmem:[#allocation7 + $0x264] sm:$0xff]
    %v224 = vld [vmem:[#allocation7 + $0x26c] sm:$0xf]
    %v225 = vld [vmem:[#allocation7 + $0x270] sm:$0xff]
    %v226 = vld [vmem:[#allocation7 + $0x278] sm:$0xf]
    %v227 = vld [vmem:[#allocation7 + $0x27c] sm:$0xff]
    %v228 = vld [vmem:[#allocation7 + $0x284] sm:$0xf]
    %v229 = vld [vmem:[#allocation7 + $0x288] sm:$0xff]
    %v230 = vld [vmem:[#allocation7 + $0x290] sm:$0xf]
    %v231 = vld [vmem:[#allocation7 + $0x294] sm:$0xff]
    %v232 = vld [vmem:[#allocation7 + $0x29c] sm:$0xf]
    %v233 = vld [vmem:[#allocation7 + $0x2a0] sm:$0xff]
    %v234 = vld [vmem:[#allocation7 + $0x2a8] sm:$0xf]
    %v235 = vld [vmem:[#allocation7 + $0x2ac] sm:$0xff]
    %v236 = vld [vmem:[#allocation7 + $0x2b4] sm:$0xf]
    %v237 = vld [vmem:[#allocation7 + $0x2b8] sm:$0xff]
    %v238 = vld [vmem:[#allocation7 + $0x2c0] sm:$0xf]
    %v239 = vld [vmem:[#allocation7 + $0x2c4] sm:$0xff]
    %v240 = vld [vmem:[#allocation7 + $0x2cc] sm:$0xf]
    %v241 = vld [vmem:[#allocation7 + $0x2d0] sm:$0xff]
    %v242 = vld [vmem:[#allocation7 + $0x2d8] sm:$0xf]
    %v243 = vld [vmem:[#allocation7 + $0x2dc] sm:$0xff]
    %v244 = vld [vmem:[#allocation7 + $0x2e4] sm:$0xf]
    %v245 = vld [vmem:[#allocation7 + $0x2e8] sm:$0xff]
    %v246 = vld [vmem:[#allocation7 + $0x2f0] sm:$0xf]
    %v247 = vld [vmem:[#allocation7 + $0x2f4] sm:$0xff]
    %v248 = vld [vmem:[#allocation7 + $0x2fc] sm:$0xf]
    %v249 = vld [vmem:[#allocation7 + $0x300] sm:$0xff]
    %v250 = vld [vmem:[#allocation7 + $0x308] sm:$0xf]
    %v251 = vld [vmem:[#allocation7 + $0x30c] sm:$0xff]
    %v252 = vld [vmem:[#allocation7 + $0x314] sm:$0xf]
    %v253 = vld [vmem:[#allocation7 + $0x318] sm:$0xff]
    %v254 = vld [vmem:[#allocation7 + $0x320] sm:$0xf]
    %v255 = vld [vmem:[#allocation7 + $0x324] sm:$0xff]
    %v256 = vld [vmem:[#allocation7 + $0x32c] sm:$0xf]
    %v257 = vld [vmem:[#allocation7 + $0x330] sm:$0xff]
    %v258 = vld [vmem:[#allocation7 + $0x338] sm:$0xf]
    %v259 = vld [vmem:[#allocation7 + $0x33c] sm:$0xff]
    %v260 = vld [vmem:[#allocation7 + $0x344] sm:$0xf]
    %v261 = vld [vmem:[#allocation7 + $0x348] sm:$0xff]
    %v262 = vld [vmem:[#allocation7 + $0x350] sm:$0xf]
    %v263 = vld [vmem:[#allocation7 + $0x354] sm:$0xff]
    %v264 = vld [vmem:[#allocation7 + $0x35c] sm:$0xf]
    %v265 = vld [vmem:[#allocation7 + $0x360] sm:$0xff]
    %v266 = vld [vmem:[#allocation7 + $0x368] sm:$0xf]
    %v267 = vld [vmem:[#allocation7 + $0x36c] sm:$0xff]
    %v268 = vld [vmem:[#allocation7 + $0x374] sm:$0xf]
    %v269 = vld [vmem:[#allocation7 + $0x378] sm:$0xff]
    %v270 = vld [vmem:[#allocation7 + $0x380] sm:$0xf]
    %v271 = vld [vmem:[#allocation7 + $0x384] sm:$0xff]
    %v272 = vld [vmem:[#allocation7 + $0x38c] sm:$0xf]
    %v273 = vld [vmem:[#allocation7 + $0x390] sm:$0xff]
    %v274 = vld [vmem:[#allocation7 + $0x398] sm:$0xf]
    %v275 = vld [vmem:[#allocation7 + $0x39c] sm:$0xff]
    %v276 = vld [vmem:[#allocation7 + $0x3a4] sm:$0xf]
    %v277 = vld [vmem:[#allocation7 + $0x3a8] sm:$0xff]
    %v278 = vld [vmem:[#allocation7 + $0x3b0] sm:$0xf]
    %v279 = vld [vmem:[#allocation7 + $0x3b4] sm:$0xff]
    %v280 = vld [vmem:[#allocation7 + $0x3bc] sm:$0xf]
    %v281 = vld [vmem:[#allocation7 + $0x3c0] sm:$0xff]
    %v282 = vld [vmem:[#allocation7 + $0x3c8] sm:$0xf]
    %v283 = vld [vmem:[#allocation7 + $0x3cc] sm:$0xff]
    %v284 = vld [vmem:[#allocation7 + $0x3d4] sm:$0xf]
    %v285 = vld [vmem:[#allocation7 + $0x3d8] sm:$0xff]
    %v286 = vld [vmem:[#allocation7 + $0x3e0] sm:$0xf]
    %v287 = vld [vmem:[#allocation7 + $0x3e4] sm:$0xff]
    %v288 = vld [vmem:[#allocation7 + $0x3ec] sm:$0xf]
    %v289 = vld [vmem:[#allocation7 + $0x3f0] sm:$0xff]
    %v290 = vld [vmem:[#allocation7 + $0x3f8] sm:$0xf]
    %v291 = vld [vmem:[#allocation7 + $0x3fc] sm:$0xff]
    %v292 = vld [vmem:[#allocation7 + $0x404] sm:$0xf]
    %v293 = vld [vmem:[#allocation7 + $0x408] sm:$0xff]
    %v294 = vld [vmem:[#allocation7 + $0x410] sm:$0xf]
    %v295 = vld [vmem:[#allocation7 + $0x414] sm:$0xff]
    %v296 = vld [vmem:[#allocation7 + $0x41c] sm:$0xf]
    %v297 = vld [vmem:[#allocation7 + $0x420] sm:$0xff]
    %v298 = vld [vmem:[#allocation7 + $0x428] sm:$0xf]
    %v299 = vld [vmem:[#allocation7 + $0x42c] sm:$0xff]
    %v300 = vld [vmem:[#allocation7 + $0x434] sm:$0xf]
    %v301 = vld [vmem:[#allocation7 + $0x438] sm:$0xff]
    %v302 = vld [vmem:[#allocation7 + $0x440] sm:$0xf]
    %v303 = vld [vmem:[#allocation7 + $0x444] sm:$0xff]
    %v304 = vld [vmem:[#allocation7 + $0x44c] sm:$0xf]
    %v305 = vld [vmem:[#allocation7 + $0x450] sm:$0xff]
    %v306 = vld [vmem:[#allocation7 + $0x458] sm:$0xf]
    %v307 = vld [vmem:[#allocation7 + $0x45c] sm:$0xff]
    %v308 = vld [vmem:[#allocation7 + $0x464] sm:$0xf]
    %v309 = vld [vmem:[#allocation7 + $0x468] sm:$0xff]
    %v310 = vld [vmem:[#allocation7 + $0x470] sm:$0xf]
    %v311 = vld [vmem:[#allocation7 + $0x474] sm:$0xff]
    %v312 = vld [vmem:[#allocation7 + $0x47c] sm:$0xf]
    %v313 = vld [vmem:[#allocation8] sm:$0x7]
    %v315 = vperm.slane %v313, 0
    %v316 = vperm.slane %v313, 1
    %v317 = vperm.slane %v313, 2
    %v324 = vunpack.c.l.b16 %v118
    %v325 = vunpack.c.h.b16 %v118
    %v326 = vunpack.c.l.b16 %v119
    %v327 = vunpack.c.h.b16 %v119
    %v328 = vunpack.c.l.b16 %v120
    %v329 = vunpack.c.h.b16 %v120
    %v330 = vpack.c.b16 %v324, %v324
    %v331 = vpack.c.b16 %v325, %v325
    %v332 = vpack.c.b16 %v326, %v326
    %v333 = vpack.c.b16 %v327, %v327
    %v334 = vpack.c.b16 %v328, %v328
    %v335 = vpack.c.b16 %v329, %v329
    %v534 = vunpack.c.l.b16 %v121
    %v535 = vunpack.c.h.b16 %v121
    %v536 = vunpack.c.l.b16 %v122
    %v537 = vunpack.c.l.b16 %v123
    %v538 = vunpack.c.h.b16 %v123
    %v539 = vunpack.c.l.b16 %v124
    %v540 = vunpack.c.l.b16 %v125
    %v541 = vunpack.c.h.b16 %v125
    %v542 = vunpack.c.l.b16 %v126
    %v543 = vunpack.c.l.b16 %v127
    %v544 = vunpack.c.h.b16 %v127
    %v545 = vunpack.c.l.b16 %v128
    %v546 = vunpack.c.l.b16 %v129
    %v547 = vunpack.c.h.b16 %v129
    %v548 = vunpack.c.l.b16 %v130
    %v549 = vunpack.c.l.b16 %v131
    %v550 = vunpack.c.h.b16 %v131
    %v551 = vunpack.c.l.b16 %v132
    %v552 = vunpack.c.l.b16 %v133
    %v553 = vunpack.c.h.b16 %v133
    %v554 = vunpack.c.l.b16 %v134
    %v555 = vunpack.c.l.b16 %v135
    %v556 = vunpack.c.h.b16 %v135
    %v557 = vunpack.c.l.b16 %v136
    %v558 = vunpack.c.l.b16 %v137
    %v559 = vunpack.c.h.b16 %v137
    %v560 = vunpack.c.l.b16 %v138
    %v561 = vunpack.c.l.b16 %v139
    %v562 = vunpack.c.h.b16 %v139
    %v563 = vunpack.c.l.b16 %v140
    %v564 = vunpack.c.l.b16 %v141
    %v565 = vunpack.c.h.b16 %v141
    %v566 = vunpack.c.l.b16 %v142
    %v567 = vunpack.c.l.b16 %v143
    %v568 = vunpack.c.h.b16 %v143
    %v569 = vunpack.c.l.b16 %v144
    %v570 = vunpack.c.l.b16 %v145
    %v571 = vunpack.c.h.b16 %v145
    %v572 = vunpack.c.l.b16 %v146
    %v573 = vunpack.c.l.b16 %v147
    %v574 = vunpack.c.h.b16 %v147
    %v575 = vunpack.c.l.b16 %v148
    %v576 = vunpack.c.l.b16 %v149
    %v577 = vunpack.c.h.b16 %v149
    %v578 = vunpack.c.l.b16 %v150
    %v579 = vunpack.c.l.b16 %v151
    %v580 = vunpack.c.h.b16 %v151
    %v581 = vunpack.c.l.b16 %v152
    %v582 = vunpack.c.l.b16 %v153
    %v583 = vunpack.c.h.b16 %v153
    %v584 = vunpack.c.l.b16 %v154
    %v585 = vunpack.c.l.b16 %v155
    %v586 = vunpack.c.h.b16 %v155
    %v587 = vunpack.c.l.b16 %v156
    %v588 = vunpack.c.l.b16 %v157
    %v589 = vunpack.c.h.b16 %v157
    %v590 = vunpack.c.l.b16 %v158
    %v591 = vunpack.c.l.b16 %v159
    %v592 = vunpack.c.h.b16 %v159
    %v593 = vunpack.c.l.b16 %v160
    %v594 = vunpack.c.l.b16 %v161
    %v595 = vunpack.c.h.b16 %v161
    %v596 = vunpack.c.l.b16 %v162
    %v597 = vunpack.c.l.b16 %v163
    %v598 = vunpack.c.h.b16 %v163
    %v599 = vunpack.c.l.b16 %v164
    %v600 = vunpack.c.l.b16 %v165
    %v601 = vunpack.c.h.b16 %v165
    %v602 = vunpack.c.l.b16 %v166
    %v603 = vunpack.c.l.b16 %v167
    %v604 = vunpack.c.h.b16 %v167
    %v605 = vunpack.c.l.b16 %v168
    %v606 = vunpack.c.l.b16 %v169
    %v607 = vunpack.c.h.b16 %v169
    %v608 = vunpack.c.l.b16 %v170
    %v609 = vunpack.c.l.b16 %v171
    %v610 = vunpack.c.h.b16 %v171
    %v611 = vunpack.c.l.b16 %v172
    %v612 = vunpack.c.l.b16 %v173
    %v613 = vunpack.c.h.b16 %v173
    %v614 = vunpack.c.l.b16 %v174
    %v615 = vunpack.c.l.b16 %v175
    %v616 = vunpack.c.h.b16 %v175
    %v617 = vunpack.c.l.b16 %v176
    %v618 = vunpack.c.l.b16 %v177
    %v619 = vunpack.c.h.b16 %v177
    %v620 = vunpack.c.l.b16 %v178
    %v621 = vunpack.c.l.b16 %v179
    %v622 = vunpack.c.h.b16 %v179
    %v623 = vunpack.c.l.b16 %v180
    %v624 = vunpack.c.l.b16 %v181
    %v625 = vunpack.c.h.b16 %v181
    %v626 = vunpack.c.l.b16 %v182
    %v627 = vunpack.c.l.b16 %v183
    %v628 = vunpack.c.h.b16 %v183
    %v629 = vunpack.c.l.b16 %v184
    %v630 = vunpack.c.l.b16 %v185
    %v631 = vunpack.c.h.b16 %v185
    %v632 = vunpack.c.l.b16 %v186
    %v633 = vunpack.c.l.b16 %v187
    %v634 = vunpack.c.h.b16 %v187
    %v635 = vunpack.c.l.b16 %v188
    %v636 = vunpack.c.l.b16 %v189
    %v637 = vunpack.c.h.b16 %v189
    %v638 = vunpack.c.l.b16 %v190
    %v639 = vunpack.c.l.b16 %v191
    %v640 = vunpack.c.h.b16 %v191
    %v641 = vunpack.c.l.b16 %v192
    %v642 = vunpack.c.l.b16 %v193
    %v643 = vunpack.c.h.b16 %v193
    %v644 = vunpack.c.l.b16 %v194
    %v645 = vunpack.c.l.b16 %v195
    %v646 = vunpack.c.h.b16 %v195
    %v647 = vunpack.c.l.b16 %v196
    %v648 = vunpack.c.l.b16 %v197
    %v649 = vunpack.c.h.b16 %v197
    %v650 = vunpack.c.l.b16 %v198
    %v651 = vunpack.c.l.b16 %v199
    %v652 = vunpack.c.h.b16 %v199
    %v653 = vunpack.c.l.b16 %v200
    %v654 = vunpack.c.l.b16 %v201
    %v655 = vunpack.c.h.b16 %v201
    %v656 = vunpack.c.l.b16 %v202
    %v657 = vunpack.c.l.b16 %v203
    %v658 = vunpack.c.h.b16 %v203
    %v659 = vunpack.c.l.b16 %v204
    %v660 = vunpack.c.l.b16 %v205
    %v661 = vunpack.c.h.b16 %v205
    %v662 = vunpack.c.l.b16 %v206
    %v663 = vunpack.c.l.b16 %v207
    %v664 = vunpack.c.h.b16 %v207
    %v665 = vunpack.c.l.b16 %v208
    %v666 = vunpack.c.l.b16 %v209
    %v667 = vunpack.c.h.b16 %v209
    %v668 = vunpack.c.l.b16 %v210
    %v669 = vunpack.c.l.b16 %v211
    %v670 = vunpack.c.h.b16 %v211
    %v671 = vunpack.c.l.b16 %v212
    %v672 = vunpack.c.l.b16 %v213
    %v673 = vunpack.c.h.b16 %v213
    %v674 = vunpack.c.l.b16 %v214
    %v675 = vunpack.c.l.b16 %v215
    %v676 = vunpack.c.h.b16 %v215
    %v677 = vunpack.c.l.b16 %v216
    %v678 = vunpack.c.l.b16 %v217
    %v679 = vunpack.c.h.b16 %v217
    %v680 = vunpack.c.l.b16 %v218
    %v681 = vunpack.c.l.b16 %v219
    %v682 = vunpack.c.h.b16 %v219
    %v683 = vunpack.c.l.b16 %v220
    %v684 = vunpack.c.l.b16 %v221
    %v685 = vunpack.c.h.b16 %v221
    %v686 = vunpack.c.l.b16 %v222
    %v687 = vunpack.c.l.b16 %v223
    %v688 = vunpack.c.h.b16 %v223
    %v689 = vunpack.c.l.b16 %v224
    %v690 = vunpack.c.l.b16 %v225
    %v691 = vunpack.c.h.b16 %v225
    %v692 = vunpack.c.l.b16 %v226
    %v693 = vunpack.c.l.b16 %v227
    %v694 = vunpack.c.h.b16 %v227
    %v695 = vunpack.c.l.b16 %v228
    %v696 = vunpack.c.l.b16 %v229
    %v697 = vunpack.c.h.b16 %v229
    %v698 = vunpack.c.l.b16 %v230
    %v699 = vunpack.c.l.b16 %v231
    %v700 = vunpack.c.h.b16 %v231
    %v701 = vunpack.c.l.b16 %v232
    %v702 = vunpack.c.l.b16 %v233
    %v703 = vunpack.c.h.b16 %v233
    %v704 = vunpack.c.l.b16 %v234
    %v705 = vunpack.c.l.b16 %v235
    %v706 = vunpack.c.h.b16 %v235
    %v707 = vunpack.c.l.b16 %v236
    %v708 = vunpack.c.l.b16 %v237
    %v709 = vunpack.c.h.b16 %v237
    %v710 = vunpack.c.l.b16 %v238
    %v711 = vunpack.c.l.b16 %v239
    %v712 = vunpack.c.h.b16 %v239
    %v713 = vunpack.c.l.b16 %v240
    %v714 = vunpack.c.l.b16 %v241
    %v715 = vunpack.c.h.b16 %v241
    %v716 = vunpack.c.l.b16 %v242
    %v717 = vunpack.c.l.b16 %v243
    %v718 = vunpack.c.h.b16 %v243
    %v719 = vunpack.c.l.b16 %v244
    %v720 = vunpack.c.l.b16 %v245
    %v721 = vunpack.c.h.b16 %v245
    %v722 = vunpack.c.l.b16 %v246
    %v723 = vunpack.c.l.b16 %v247
    %v724 = vunpack.c.h.b16 %v247
    %v725 = vunpack.c.l.b16 %v248
    %v726 = vunpack.c.l.b16 %v249
    %v727 = vunpack.c.h.b16 %v249
    %v728 = vunpack.c.l.b16 %v250
    %v729 = vunpack.c.l.b16 %v251
    %v730 = vunpack.c.h.b16 %v251
    %v731 = vunpack.c.l.b16 %v252
    %v732 = vunpack.c.l.b16 %v253
    %v733 = vunpack.c.h.b16 %v253
    %v734 = vunpack.c.l.b16 %v254
    %v735 = vunpack.c.l.b16 %v255
    %v736 = vunpack.c.h.b16 %v255
    %v737 = vunpack.c.l.b16 %v256
    %v738 = vunpack.c.l.b16 %v257
    %v739 = vunpack.c.h.b16 %v257
    %v740 = vunpack.c.l.b16 %v258
    %v741 = vunpack.c.l.b16 %v259
    %v742 = vunpack.c.h.b16 %v259
    %v743 = vunpack.c.l.b16 %v260
    %v744 = vunpack.c.l.b16 %v261
    %v745 = vunpack.c.h.b16 %v261
    %v746 = vunpack.c.l.b16 %v262
    %v747 = vunpack.c.l.b16 %v263
    %v748 = vunpack.c.h.b16 %v263
    %v749 = vunpack.c.l.b16 %v264
    %v750 = vunpack.c.l.b16 %v265
    %v751 = vunpack.c.h.b16 %v265
    %v752 = vunpack.c.l.b16 %v266
    %v753 = vunpack.c.l.b16 %v267
    %v754 = vunpack.c.h.b16 %v267
    %v755 = vunpack.c.l.b16 %v268
    %v756 = vunpack.c.l.b16 %v269
    %v757 = vunpack.c.h.b16 %v269
    %v758 = vunpack.c.l.b16 %v270
    %v759 = vunpack.c.l.b16 %v271
    %v760 = vunpack.c.h.b16 %v271
    %v761 = vunpack.c.l.b16 %v272
    %v762 = vunpack.c.l.b16 %v273
    %v763 = vunpack.c.h.b16 %v273
    %v764 = vunpack.c.l.b16 %v274
    %v765 = vunpack.c.l.b16 %v275
    %v766 = vunpack.c.h.b16 %v275
    %v767 = vunpack.c.l.b16 %v276
    %v768 = vunpack.c.l.b16 %v277
    %v769 = vunpack.c.h.b16 %v277
    %v770 = vunpack.c.l.b16 %v278
    %v771 = vunpack.c.l.b16 %v279
    %v772 = vunpack.c.h.b16 %v279
    %v773 = vunpack.c.l.b16 %v280
    %v774 = vunpack.c.l.b16 %v281
    %v775 = vunpack.c.h.b16 %v281
    %v776 = vunpack.c.l.b16 %v282
    %v777 = vunpack.c.l.b16 %v283
    %v778 = vunpack.c.h.b16 %v283
    %v779 = vunpack.c.l.b16 %v284
    %v780 = vunpack.c.l.b16 %v285
    %v781 = vunpack.c.h.b16 %v285
    %v782 = vunpack.c.l.b16 %v286
    %v783 = vunpack.c.l.b16 %v287
    %v784 = vunpack.c.h.b16 %v287
    %v785 = vunpack.c.l.b16 %v288
    %v786 = vunpack.c.l.b16 %v289
    %v787 = vunpack.c.h.b16 %v289
    %v788 = vunpack.c.l.b16 %v290
    %v789 = vunpack.c.l.b16 %v291
    %v790 = vunpack.c.h.b16 %v291
    %v791 = vunpack.c.l.b16 %v292
    %v792 = vunpack.c.l.b16 %v293
    %v793 = vunpack.c.h.b16 %v293
    %v794 = vunpack.c.l.b16 %v294
    %v795 = vunpack.c.l.b16 %v295
    %v796 = vunpack.c.h.b16 %v295
    %v797 = vunpack.c.l.b16 %v296
    %v798 = vunpack.c.l.b16 %v297
    %v799 = vunpack.c.h.b16 %v297
    %v800 = vunpack.c.l.b16 %v298
    %v801 = vunpack.c.l.b16 %v299
    %v802 = vunpack.c.h.b16 %v299
    %v803 = vunpack.c.l.b16 %v300
    %v804 = vunpack.c.l.b16 %v301
    %v805 = vunpack.c.h.b16 %v301
    %v806 = vunpack.c.l.b16 %v302
    %v807 = vunpack.c.l.b16 %v303
    %v808 = vunpack.c.h.b16 %v303
    %v809 = vunpack.c.l.b16 %v304
    %v810 = vunpack.c.l.b16 %v305
    %v811 = vunpack.c.h.b16 %v305
    %v812 = vunpack.c.l.b16 %v306
    %v813 = vunpack.c.l.b16 %v307
    %v814 = vunpack.c.h.b16 %v307
    %v815 = vunpack.c.l.b16 %v308
    %v816 = vunpack.c.l.b16 %v309
    %v817 = vunpack.c.h.b16 %v309
    %v818 = vunpack.c.l.b16 %v310
    %v819 = vunpack.c.l.b16 %v311
    %v820 = vunpack.c.h.b16 %v311
    %v821 = vunpack.c.l.b16 %v312
    %v822 = vpack.c.b16 %v537, %v534
    %v823 = vpack.c.b16 %v538, %v535
    %v824 = vpack.c.b16 %v539, %v536
    %v825 = vpack.c.b16 %v543, %v540
    %v826 = vpack.c.b16 %v544, %v541
    %v827 = vpack.c.b16 %v545, %v542
    %v828 = vpack.c.b16 %v549, %v546
    %v829 = vpack.c.b16 %v550, %v547
    %v830 = vpack.c.b16 %v551, %v548
    %v831 = vpack.c.b16 %v555, %v552
    %v832 = vpack.c.b16 %v556, %v553
    %v833 = vpack.c.b16 %v557, %v554
    %v834 = vpack.c.b16 %v561, %v558
    %v835 = vpack.c.b16 %v562, %v559
    %v836 = vpack.c.b16 %v563, %v560
    %v837 = vpack.c.b16 %v567, %v564
    %v838 = vpack.c.b16 %v568, %v565
    %v839 = vpack.c.b16 %v569, %v566
    %v840 = vpack.c.b16 %v573, %v570
    %v841 = vpack.c.b16 %v574, %v571
    %v842 = vpack.c.b16 %v575, %v572
    %v843 = vpack.c.b16 %v579, %v576
    %v844 = vpack.c.b16 %v580, %v577
    %v845 = vpack.c.b16 %v581, %v578
    %v846 = vpack.c.b16 %v585, %v582
    %v847 = vpack.c.b16 %v586, %v583
    %v848 = vpack.c.b16 %v587, %v584
    %v849 = vpack.c.b16 %v591, %v588
    %v850 = vpack.c.b16 %v592, %v589
    %v851 = vpack.c.b16 %v593, %v590
    %v852 = vpack.c.b16 %v597, %v594
    %v853 = vpack.c.b16 %v598, %v595
    %v854 = vpack.c.b16 %v599, %v596
    %v855 = vpack.c.b16 %v603, %v600
    %v856 = vpack.c.b16 %v604, %v601
    %v857 = vpack.c.b16 %v605, %v602
    %v858 = vpack.c.b16 %v609, %v606
    %v859 = vpack.c.b16 %v610, %v607
    %v860 = vpack.c.b16 %v611, %v608
    %v861 = vpack.c.b16 %v615, %v612
    %v862 = vpack.c.b16 %v616, %v613
    %v863 = vpack.c.b16 %v617, %v614
    %v864 = vpack.c.b16 %v621, %v618
    %v865 = vpack.c.b16 %v622, %v619
    %v866 = vpack.c.b16 %v623, %v620
    %v867 = vpack.c.b16 %v627, %v624
    %v868 = vpack.c.b16 %v628, %v625
    %v869 = vpack.c.b16 %v629, %v626
    %v870 = vpack.c.b16 %v633, %v630
    %v871 = vpack.c.b16 %v634, %v631
    %v872 = vpack.c.b16 %v635, %v632
    %v873 = vpack.c.b16 %v639, %v636
    %v874 = vpack.c.b16 %v640, %v637
    %v875 = vpack.c.b16 %v641, %v638
    %v876 = vpack.c.b16 %v645, %v642
    %v877 = vpack.c.b16 %v646, %v643
    %v878 = vpack.c.b16 %v647, %v644
    %v879 = vpack.c.b16 %v651, %v648
    %v880 = vpack.c.b16 %v652, %v649
    %v881 = vpack.c.b16 %v653, %v650
    %v882 = vpack.c.b16 %v657, %v654
    %v883 = vpack.c.b16 %v658, %v655
    %v884 = vpack.c.b16 %v659, %v656
    %v885 = vpack.c.b16 %v663, %v660
    %v886 = vpack.c.b16 %v664, %v661
    %v887 = vpack.c.b16 %v665, %v662
    %v888 = vpack.c.b16 %v669, %v666
    %v889 = vpack.c.b16 %v670, %v667
    %v890 = vpack.c.b16 %v671, %v668
    %v891 = vpack.c.b16 %v675, %v672
    %v892 = vpack.c.b16 %v676, %v673
    %v893 = vpack.c.b16 %v677, %v674
    %v894 = vpack.c.b16 %v681, %v678
    %v895 = vpack.c.b16 %v682, %v679
    %v896 = vpack.c.b16 %v683, %v680
    %v897 = vpack.c.b16 %v687, %v684
    %v898 = vpack.c.b16 %v688, %v685
    %v899 = vpack.c.b16 %v689, %v686
    %v900 = vpack.c.b16 %v693, %v690
    %v901 = vpack.c.b16 %v694, %v691
    %v902 = vpack.c.b16 %v695, %v692
    %v903 = vpack.c.b16 %v699, %v696
    %v904 = vpack.c.b16 %v700, %v697
    %v905 = vpack.c.b16 %v701, %v698
    %v906 = vpack.c.b16 %v705, %v702
    %v907 = vpack.c.b16 %v706, %v703
    %v908 = vpack.c.b16 %v707, %v704
    %v909 = vpack.c.b16 %v711, %v708
    %v910 = vpack.c.b16 %v712, %v709
    %v911 = vpack.c.b16 %v713, %v710
    %v912 = vpack.c.b16 %v717, %v714
    %v913 = vpack.c.b16 %v718, %v715
    %v914 = vpack.c.b16 %v719, %v716
    %v915 = vpack.c.b16 %v723, %v720
    %v916 = vpack.c.b16 %v724, %v721
    %v917 = vpack.c.b16 %v725, %v722
    %v918 = vpack.c.b16 %v729, %v726
    %v919 = vpack.c.b16 %v730, %v727
    %v920 = vpack.c.b16 %v731, %v728
    %v921 = vpack.c.b16 %v735, %v732
    %v922 = vpack.c.b16 %v736, %v733
    %v923 = vpack.c.b16 %v737, %v734
    %v924 = vpack.c.b16 %v741, %v738
    %v925 = vpack.c.b16 %v742, %v739
    %v926 = vpack.c.b16 %v743, %v740
    %v927 = vpack.c.b16 %v747, %v744
    %v928 = vpack.c.b16 %v748, %v745
    %v929 = vpack.c.b16 %v749, %v746
    %v930 = vpack.c.b16 %v753, %v750
    %v931 = vpack.c.b16 %v754, %v751
    %v932 = vpack.c.b16 %v755, %v752
    %v933 = vpack.c.b16 %v759, %v756
    %v934 = vpack.c.b16 %v760, %v757
    %v935 = vpack.c.b16 %v761, %v758
    %v936 = vpack.c.b16 %v765, %v762
    %v937 = vpack.c.b16 %v766, %v763
    %v938 = vpack.c.b16 %v767, %v764
    %v939 = vpack.c.b16 %v771, %v768
    %v940 = vpack.c.b16 %v772, %v769
    %v941 = vpack.c.b16 %v773, %v770
    %v942 = vpack.c.b16 %v777, %v774
    %v943 = vpack.c.b16 %v778, %v775
    %v944 = vpack.c.b16 %v779, %v776
    %v945 = vpack.c.b16 %v783, %v780
    %v946 = vpack.c.b16 %v784, %v781
    %v947 = vpack.c.b16 %v785, %v782
    %v948 = vpack.c.b16 %v789, %v786
    %v949 = vpack.c.b16 %v790, %v787
    %v950 = vpack.c.b16 %v791, %v788
    %v951 = vpack.c.b16 %v795, %v792
    %v952 = vpack.c.b16 %v796, %v793
    %v953 = vpack.c.b16 %v797, %v794
    %v954 = vpack.c.b16 %v801, %v798
    %v955 = vpack.c.b16 %v802, %v799
    %v956 = vpack.c.b16 %v803, %v800
    %v957 = vpack.c.b16 %v807, %v804
    %v958 = vpack.c.b16 %v808, %v805
    %v959 = vpack.c.b16 %v809, %v806
    %v960 = vpack.c.b16 %v813, %v810
    %v961 = vpack.c.b16 %v814, %v811
    %v962 = vpack.c.b16 %v815, %v812
    %v963 = vpack.c.b16 %v819, %v816
    %v964 = vpack.c.b16 %v820, %v817
    %v965 = vpack.c.b16 %v821, %v818
    %1110 = vmatpush.bf16.msra.mxu0 %v843
    %1111 = vmatpush.bf16.msra.mxu0 %v840
    %1112 = vmatpush.bf16.msra.mxu0 %v837
    %1113 = vmatpush.bf16.msra.mxu0 %v834
    %1114 = vmatpush.bf16.msra.mxu0 %v831
    %1115 = vmatpush.bf16.msra.mxu0 %v828
    %1116 = vmatpush.bf16.msra.mxu0 %v825
    %1117 = vmatpush.bf16.msra.mxu0 %v822
    %1118 = vmatmul.bf16.gmra.mxu0 %v330
    %v1119 = vpop.f32.mrf.mxu0
    %v1120 = vadd.f32 %v315, %v1119
    %v1121 = vpop.f32.mrf.mxu0
    %1122 = vdwg.mxu0
    %1123 = vmatpush.bf16.msra.mxu0 %v867
    %1124 = vmatpush.bf16.msra.mxu0 %v864
    %1125 = vmatpush.bf16.msra.mxu0 %v861
    %1126 = vmatpush.bf16.msra.mxu0 %v858
    %1127 = vmatpush.bf16.msra.mxu0 %v855
    %1128 = vmatpush.bf16.msra.mxu0 %v852
    %1129 = vmatpush.bf16.msra.mxu0 %v849
    %1130 = vmatpush.bf16.msra.mxu0 %v846
    %1131 = vmatmul.bf16.gmra.mxu0 %v331
    %v1132 = vpop.f32.mrf.mxu0
    %v1133 = vadd.f32 %v1120, %v1132
    %v1134 = vpop.f32.mrf.mxu0
    %1135 = vdwg.mxu0
    %1136 = vmatpush.bf16.msra.mxu0 %v891
    %1137 = vmatpush.bf16.msra.mxu0 %v888
    %1138 = vmatpush.bf16.msra.mxu0 %v885
    %1139 = vmatpush.bf16.msra.mxu0 %v882
    %1140 = vmatpush.bf16.msra.mxu0 %v879
    %1141 = vmatpush.bf16.msra.mxu0 %v876
    %1142 = vmatpush.bf16.msra.mxu0 %v873
    %1143 = vmatpush.bf16.msra.mxu0 %v870
    %1144 = vmatmul.bf16.gmra.mxu0 %v332
    %v1145 = vpop.f32.mrf.mxu0
    %v1146 = vadd.f32 %v1133, %v1145
    %v1147 = vpop.f32.mrf.mxu0
    %1148 = vdwg.mxu0
    %1149 = vmatpush.bf16.msra.mxu0 %v915
    %1150 = vmatpush.bf16.msra.mxu0 %v912
    %1151 = vmatpush.bf16.msra.mxu0 %v909
    %1152 = vmatpush.bf16.msra.mxu0 %v906
    %1153 = vmatpush.bf16.msra.mxu0 %v903
    %1154 = vmatpush.bf16.msra.mxu0 %v900
    %1155 = vmatpush.bf16.msra.mxu0 %v897
    %1156 = vmatpush.bf16.msra.mxu0 %v894
    %1157 = vmatmul.bf16.gmra.mxu0 %v333
    %v1158 = vpop.f32.mrf.mxu0
    %v1159 = vadd.f32 %v1146, %v1158
    %v1160 = vpop.f32.mrf.mxu0
    %1161 = vdwg.mxu0
    %1162 = vmatpush.bf16.msra.mxu0 %v939
    %1163 = vmatpush.bf16.msra.mxu0 %v936
    %1164 = vmatpush.bf16.msra.mxu0 %v933
    %1165 = vmatpush.bf16.msra.mxu0 %v930
    %1166 = vmatpush.bf16.msra.mxu0 %v927
    %1167 = vmatpush.bf16.msra.mxu0 %v924
    %1168 = vmatpush.bf16.msra.mxu0 %v921
    %1169 = vmatpush.bf16.msra.mxu0 %v918
    %1170 = vmatmul.bf16.gmra.mxu0 %v334
    %v1171 = vpop.f32.mrf.mxu0
    %v1172 = vadd.f32 %v1159, %v1171
    %v1173 = vpop.f32.mrf.mxu0
    %1174 = vdwg.mxu0
    %1175 = vmatpush.bf16.msra.mxu0 %v963
    %1176 = vmatpush.bf16.msra.mxu0 %v960
    %1177 = vmatpush.bf16.msra.mxu0 %v957
    %1178 = vmatpush.bf16.msra.mxu0 %v954
    %1179 = vmatpush.bf16.msra.mxu0 %v951
    %1180 = vmatpush.bf16.msra.mxu0 %v948
    %1181 = vmatpush.bf16.msra.mxu0 %v945
    %1182 = vmatpush.bf16.msra.mxu0 %v942
    %1183 = vmatmul.bf16.gmra.mxu0 %v335
    %v1184 = vpop.f32.mrf.mxu0
    %v1185 = vadd.f32 %v1172, %v1184
    %v1186 = vpop.f32.mrf.mxu0
    %1187 = vdwg.mxu0
    %1188 = vmatpush.bf16.msra.mxu0 %v844
    %1189 = vmatpush.bf16.msra.mxu0 %v841
    %1190 = vmatpush.bf16.msra.mxu0 %v838
    %1191 = vmatpush.bf16.msra.mxu0 %v835
    %1192 = vmatpush.bf16.msra.mxu0 %v832
    %1193 = vmatpush.bf16.msra.mxu0 %v829
    %1194 = vmatpush.bf16.msra.mxu0 %v826
    %1195 = vmatpush.bf16.msra.mxu0 %v823
    %1196 = vmatmul.bf16.gmra.mxu0 %v330
    %v1197 = vpop.f32.mrf.mxu0
    %v1198 = vadd.f32 %v316, %v1197
    %v1199 = vpop.f32.mrf.mxu0
    %1200 = vdwg.mxu0
    %1201 = vmatpush.bf16.msra.mxu0 %v868
    %1202 = vmatpush.bf16.msra.mxu0 %v865
    %1203 = vmatpush.bf16.msra.mxu0 %v862
    %1204 = vmatpush.bf16.msra.mxu0 %v859
    %1205 = vmatpush.bf16.msra.mxu0 %v856
    %1206 = vmatpush.bf16.msra.mxu0 %v853
    %1207 = vmatpush.bf16.msra.mxu0 %v850
    %1208 = vmatpush.bf16.msra.mxu0 %v847
    %1209 = vmatmul.bf16.gmra.mxu0 %v331
    %v1210 = vpop.f32.mrf.mxu0
    %v1211 = vadd.f32 %v1198, %v1210
    %v1212 = vpop.f32.mrf.mxu0
    %1213 = vdwg.mxu0
    %1214 = vmatpush.bf16.msra.mxu0 %v892
    %1215 = vmatpush.bf16.msra.mxu0 %v889
    %1216 = vmatpush.bf16.msra.mxu0 %v886
    %1217 = vmatpush.bf16.msra.mxu0 %v883
    %1218 = vmatpush.bf16.msra.mxu0 %v880
    %1219 = vmatpush.bf16.msra.mxu0 %v877
    %1220 = vmatpush.bf16.msra.mxu0 %v874
    %1221 = vmatpush.bf16.msra.mxu0 %v871
    %1222 = vmatmul.bf16.gmra.mxu0 %v332
    %v1223 = vpop.f32.mrf.mxu0
    %v1224 = vadd.f32 %v1211, %v1223
    %v1225 = vpop.f32.mrf.mxu0
    %1226 = vdwg.mxu0
    %1227 = vmatpush.bf16.msra.mxu0 %v916
    %1228 = vmatpush.bf16.msra.mxu0 %v913
    %1229 = vmatpush.bf16.msra.mxu0 %v910
    %1230 = vmatpush.bf16.msra.mxu0 %v907
    %1231 = vmatpush.bf16.msra.mxu0 %v904
    %1232 = vmatpush.bf16.msra.mxu0 %v901
    %1233 = vmatpush.bf16.msra.mxu0 %v898
    %1234 = vmatpush.bf16.msra.mxu0 %v895
    %1235 = vmatmul.bf16.gmra.mxu0 %v333
    %v1236 = vpop.f32.mrf.mxu0
    %v1237 = vadd.f32 %v1224, %v1236
    %v1238 = vpop.f32.mrf.mxu0
    %1239 = vdwg.mxu0
    %1240 = vmatpush.bf16.msra.mxu0 %v940
    %1241 = vmatpush.bf16.msra.mxu0 %v937
    %1242 = vmatpush.bf16.msra.mxu0 %v934
    %1243 = vmatpush.bf16.msra.mxu0 %v931
    %1244 = vmatpush.bf16.msra.mxu0 %v928
    %1245 = vmatpush.bf16.msra.mxu0 %v925
    %1246 = vmatpush.bf16.msra.mxu0 %v922
    %1247 = vmatpush.bf16.msra.mxu0 %v919
    %1248 = vmatmul.bf16.gmra.mxu0 %v334
    %v1249 = vpop.f32.mrf.mxu0
    %v1250 = vadd.f32 %v1237, %v1249
    %v1251 = vpop.f32.mrf.mxu0
    %1252 = vdwg.mxu0
    %1253 = vmatpush.bf16.msra.mxu0 %v964
    %1254 = vmatpush.bf16.msra.mxu0 %v961
    %1255 = vmatpush.bf16.msra.mxu0 %v958
    %1256 = vmatpush.bf16.msra.mxu0 %v955
    %1257 = vmatpush.bf16.msra.mxu0 %v952
    %1258 = vmatpush.bf16.msra.mxu0 %v949
    %1259 = vmatpush.bf16.msra.mxu0 %v946
    %1260 = vmatpush.bf16.msra.mxu0 %v943
    %1261 = vmatmul.bf16.gmra.mxu0 %v335
    %v1262 = vpop.f32.mrf.mxu0
    %v1263 = vadd.f32 %v1250, %v1262
    %v1264 = vpop.f32.mrf.mxu0
    %1265 = vdwg.mxu0
    %1266 = vmatpush.bf16.msra.mxu0 %v845
    %1267 = vmatpush.bf16.msra.mxu0 %v842
    %1268 = vmatpush.bf16.msra.mxu0 %v839
    %1269 = vmatpush.bf16.msra.mxu0 %v836
    %1270 = vmatpush.bf16.msra.mxu0 %v833
    %1271 = vmatpush.bf16.msra.mxu0 %v830
    %1272 = vmatpush.bf16.msra.mxu0 %v827
    %1273 = vmatpush.bf16.msra.mxu0 %v824
    %1274 = vmatmul.bf16.gmra.mxu0 %v330
    %v1275 = vpop.f32.mrf.mxu0
    %v1276 = vadd.f32 %v317, %v1275
    %v1277 = vpop.f32.mrf.mxu0
    %1278 = vdwg.mxu0
    %1279 = vmatpush.bf16.msra.mxu0 %v869
    %1280 = vmatpush.bf16.msra.mxu0 %v866
    %1281 = vmatpush.bf16.msra.mxu0 %v863
    %1282 = vmatpush.bf16.msra.mxu0 %v860
    %1283 = vmatpush.bf16.msra.mxu0 %v857
    %1284 = vmatpush.bf16.msra.mxu0 %v854
    %1285 = vmatpush.bf16.msra.mxu0 %v851
    %1286 = vmatpush.bf16.msra.mxu0 %v848
    %1287 = vmatmul.bf16.gmra.mxu0 %v331
    %v1288 = vpop.f32.mrf.mxu0
    %v1289 = vadd.f32 %v1276, %v1288
    %v1290 = vpop.f32.mrf.mxu0
    %1291 = vdwg.mxu0
    %1292 = vmatpush.bf16.msra.mxu0 %v893
    %1293 = vmatpush.bf16.msra.mxu0 %v890
    %1294 = vmatpush.bf16.msra.mxu0 %v887
    %1295 = vmatpush.bf16.msra.mxu0 %v884
    %1296 = vmatpush.bf16.msra.mxu0 %v881
    %1297 = vmatpush.bf16.msra.mxu0 %v878
    %1298 = vmatpush.bf16.msra.mxu0 %v875
    %1299 = vmatpush.bf16.msra.mxu0 %v872
    %1300 = vmatmul.bf16.gmra.mxu0 %v332
    %v1301 = vpop.f32.mrf.mxu0
    %v1302 = vadd.f32 %v1289, %v1301
    %v1303 = vpop.f32.mrf.mxu0
    %1304 = vdwg.mxu0
    %1305 = vmatpush.bf16.msra.mxu0 %v917
    %1306 = vmatpush.bf16.msra.mxu0 %v914
    %1307 = vmatpush.bf16.msra.mxu0 %v911
    %1308 = vmatpush.bf16.msra.mxu0 %v908
    %1309 = vmatpush.bf16.msra.mxu0 %v905
    %1310 = vmatpush.bf16.msra.mxu0 %v902
    %1311 = vmatpush.bf16.msra.mxu0 %v899
    %1312 = vmatpush.bf16.msra.mxu0 %v896
    %1313 = vmatmul.bf16.gmra.mxu0 %v333
    %v1314 = vpop.f32.mrf.mxu0
    %v1315 = vadd.f32 %v1302, %v1314
    %v1316 = vpop.f32.mrf.mxu0
    %1317 = vdwg.mxu0
    %1318 = vmatpush.bf16.msra.mxu0 %v941
    %1319 = vmatpush.bf16.msra.mxu0 %v938
    %1320 = vmatpush.bf16.msra.mxu0 %v935
    %1321 = vmatpush.bf16.msra.mxu0 %v932
    %1322 = vmatpush.bf16.msra.mxu0 %v929
    %1323 = vmatpush.bf16.msra.mxu0 %v926
    %1324 = vmatpush.bf16.msra.mxu0 %v923
    %1325 = vmatpush.bf16.msra.mxu0 %v920
    %1326 = vmatmul.bf16.gmra.mxu0 %v334
    %v1327 = vpop.f32.mrf.mxu0
    %v1328 = vadd.f32 %v1315, %v1327
    %v1329 = vpop.f32.mrf.mxu0
    %1330 = vdwg.mxu0
    %1331 = vmatpush.bf16.msra.mxu0 %v965
    %1332 = vmatpush.bf16.msra.mxu0 %v962
    %1333 = vmatpush.bf16.msra.mxu0 %v959
    %1334 = vmatpush.bf16.msra.mxu0 %v956
    %1335 = vmatpush.bf16.msra.mxu0 %v953
    %1336 = vmatpush.bf16.msra.mxu0 %v950
    %1337 = vmatpush.bf16.msra.mxu0 %v947
    %1338 = vmatpush.bf16.msra.mxu0 %v944
    %1339 = vmatmul.bf16.gmra.mxu0 %v335
    %v1340 = vpop.f32.mrf.mxu0
    %v1341 = vadd.f32 %v1328, %v1340
    %v1342 = vpop.f32.mrf.mxu0
    %1343 = vdwg.mxu0
    %v1344 = vmax.f32 %v1185, 0.0
    %v1345 = vmax.f32 %v1263, 0.0
    %v1346 = vmax.f32 %v1341, 0.0
    %v1347 = vld [vmem:[#allocation5] sm:$0xff]
    %v1348 = vld [vmem:[#allocation5 + $0x8] sm:$0xff]
    %v1349 = vld [vmem:[#allocation5 + $0x10] sm:$0xff]
    %v1350 = vmul.f32 %v1344, %v1347
    %v1351 = vmul.f32 %v1345, %v1348
    %v1352 = vmul.f32 %v1346, %v1349
    %v1353 = vpack.c.bf16 %v1350, %v1350
    %v1354 = vpack.c.bf16 %v1351, %v1351
    %v1355 = vpack.c.bf16 %v1352, %v1352
    %v1356 = vld [vmem:[#allocation10] sm:$0xf]
    %v1357 = vld [vmem:[#allocation10 + $0x4] sm:$0xf]
    %v1358 = vld [vmem:[#allocation10 + $0x8] sm:$0xf]
    %v1359 = vld [vmem:[#allocation10 + $0xc] sm:$0xf]
    %v1360 = vld [vmem:[#allocation10 + $0x10] sm:$0xf]
    %v1361 = vld [vmem:[#allocation10 + $0x14] sm:$0xf]
    %v1362 = vld [vmem:[#allocation10 + $0x18] sm:$0xf]
    %v1363 = vld [vmem:[#allocation10 + $0x1c] sm:$0xf]
    %v1364 = vld [vmem:[#allocation10 + $0x20] sm:$0xf]
    %v1365 = vld [vmem:[#allocation10 + $0x24] sm:$0xf]
    %v1366 = vld [vmem:[#allocation10 + $0x28] sm:$0xf]
    %v1367 = vld [vmem:[#allocation10 + $0x2c] sm:$0xf]
    %v1368 = vld [vmem:[#allocation10 + $0x30] sm:$0xf]
    %v1369 = vld [vmem:[#allocation10 + $0x34] sm:$0xf]
    %v1370 = vld [vmem:[#allocation10 + $0x38] sm:$0xf]
    %v1371 = vld [vmem:[#allocation10 + $0x3c] sm:$0xf]
    %v1372 = vld [vmem:[#allocation10 + $0x40] sm:$0xf]
    %v1373 = vld [vmem:[#allocation10 + $0x44] sm:$0xf]
    %v1374 = vld [vmem:[#allocation10 + $0x48] sm:$0xf]
    %v1375 = vld [vmem:[#allocation10 + $0x4c] sm:$0xf]
    %v1376 = vld [vmem:[#allocation10 + $0x50] sm:$0xf]
    %v1377 = vld [vmem:[#allocation10 + $0x54] sm:$0xf]
    %v1378 = vld [vmem:[#allocation10 + $0x58] sm:$0xf]
    %v1379 = vld [vmem:[#allocation10 + $0x5c] sm:$0xf]
    %v1380 = vld [vmem:[#allocation10 + $0x60] sm:$0xf]
    %v1381 = vld [vmem:[#allocation10 + $0x64] sm:$0xf]
    %v1382 = vld [vmem:[#allocation10 + $0x68] sm:$0xf]
    %v1383 = vld [vmem:[#allocation10 + $0x6c] sm:$0xf]
    %v1384 = vld [vmem:[#allocation10 + $0x70] sm:$0xf]
    %v1385 = vld [vmem:[#allocation10 + $0x74] sm:$0xf]
    %v1386 = vld [vmem:[#allocation10 + $0x78] sm:$0xf]
    %v1387 = vld [vmem:[#allocation10 + $0x7c] sm:$0xf]
    %v1388 = vld [vmem:[#allocation10 + $0x80] sm:$0xf]
    %v1389 = vld [vmem:[#allocation10 + $0x84] sm:$0xf]
    %v1390 = vld [vmem:[#allocation10 + $0x88] sm:$0xf]
    %v1391 = vld [vmem:[#allocation10 + $0x8c] sm:$0xf]
    %v1392 = vld [vmem:[#allocation10 + $0x90] sm:$0xf]
    %v1393 = vld [vmem:[#allocation10 + $0x94] sm:$0xf]
    %v1394 = vld [vmem:[#allocation10 + $0x98] sm:$0xf]
    %v1395 = vld [vmem:[#allocation10 + $0x9c] sm:$0xf]
    %v1396 = vld [vmem:[#allocation10 + $0xa0] sm:$0xf]
    %v1397 = vld [vmem:[#allocation10 + $0xa4] sm:$0xf]
    %v1398 = vld [vmem:[#allocation10 + $0xa8] sm:$0xf]
    %v1399 = vld [vmem:[#allocation10 + $0xac] sm:$0xf]
    %v1400 = vld [vmem:[#allocation10 + $0xb0] sm:$0xf]
    %v1401 = vld [vmem:[#allocation10 + $0xb4] sm:$0xf]
    %v1402 = vld [vmem:[#allocation10 + $0xb8] sm:$0xf]
    %v1403 = vld [vmem:[#allocation10 + $0xbc] sm:$0xf]
    %v1404 = vld [vmem:[%s5] sm:$0x1]
    %v1406 = vperm.slane %v1404, 0
    %v1456 = vunpack.c.l.b16 %v1356
    %v1457 = vunpack.c.l.b16 %v1357
    %v1458 = vunpack.c.l.b16 %v1358
    %v1459 = vunpack.c.l.b16 %v1359
    %v1460 = vunpack.c.l.b16 %v1360
    %v1461 = vunpack.c.l.b16 %v1361
    %v1462 = vunpack.c.l.b16 %v1362
    %v1463 = vunpack.c.l.b16 %v1363
    %v1464 = vunpack.c.l.b16 %v1364
    %v1465 = vunpack.c.l.b16 %v1365
    %v1466 = vunpack.c.l.b16 %v1366
    %v1467 = vunpack.c.l.b16 %v1367
    %v1468 = vunpack.c.l.b16 %v1368
    %v1469 = vunpack.c.l.b16 %v1369
    %v1470 = vunpack.c.l.b16 %v1370
    %v1471 = vunpack.c.l.b16 %v1371
    %v1472 = vunpack.c.l.b16 %v1372
    %v1473 = vunpack.c.l.b16 %v1373
    %v1474 = vunpack.c.l.b16 %v1374
    %v1475 = vunpack.c.l.b16 %v1375
    %v1476 = vunpack.c.l.b16 %v1376
    %v1477 = vunpack.c.l.b16 %v1377
    %v1478 = vunpack.c.l.b16 %v1378
    %v1479 = vunpack.c.l.b16 %v1379
    %v1480 = vunpack.c.l.b16 %v1380
    %v1481 = vunpack.c.l.b16 %v1381
    %v1482 = vunpack.c.l.b16 %v1382
    %v1483 = vunpack.c.l.b16 %v1383
    %v1484 = vunpack.c.l.b16 %v1384
    %v1485 = vunpack.c.l.b16 %v1385
    %v1486 = vunpack.c.l.b16 %v1386
    %v1487 = vunpack.c.l.b16 %v1387
    %v1488 = vunpack.c.l.b16 %v1388
    %v1489 = vunpack.c.l.b16 %v1389
    %v1490 = vunpack.c.l.b16 %v1390
    %v1491 = vunpack.c.l.b16 %v1391
    %v1492 = vunpack.c.l.b16 %v1392
    %v1493 = vunpack.c.l.b16 %v1393
    %v1494 = vunpack.c.l.b16 %v1394
    %v1495 = vunpack.c.l.b16 %v1395
    %v1496 = vunpack.c.l.b16 %v1396
    %v1497 = vunpack.c.l.b16 %v1397
    %v1498 = vunpack.c.l.b16 %v1398
    %v1499 = vunpack.c.l.b16 %v1399
    %v1500 = vunpack.c.l.b16 %v1400
    %v1501 = vunpack.c.l.b16 %v1401
    %v1502 = vunpack.c.l.b16 %v1402
    %v1503 = vunpack.c.l.b16 %v1403
    %v1504 = vpack.c.b16 %v1457, %v1456
    %v1505 = vpack.c.b16 %v1459, %v1458
    %v1506 = vpack.c.b16 %v1461, %v1460
    %v1507 = vpack.c.b16 %v1463, %v1462
    %v1508 = vpack.c.b16 %v1465, %v1464
    %v1509 = vpack.c.b16 %v1467, %v1466
    %v1510 = vpack.c.b16 %v1469, %v1468
    %v1511 = vpack.c.b16 %v1471, %v1470
    %v1512 = vpack.c.b16 %v1473, %v1472
    %v1513 = vpack.c.b16 %v1475, %v1474
    %v1514 = vpack.c.b16 %v1477, %v1476
    %v1515 = vpack.c.b16 %v1479, %v1478
    %v1516 = vpack.c.b16 %v1481, %v1480
    %v1517 = vpack.c.b16 %v1483, %v1482
    %v1518 = vpack.c.b16 %v1485, %v1484
    %v1519 = vpack.c.b16 %v1487, %v1486
    %v1520 = vpack.c.b16 %v1489, %v1488
    %v1521 = vpack.c.b16 %v1491, %v1490
    %v1522 = vpack.c.b16 %v1493, %v1492
    %v1523 = vpack.c.b16 %v1495, %v1494
    %v1524 = vpack.c.b16 %v1497, %v1496
    %v1525 = vpack.c.b16 %v1499, %v1498
    %v1526 = vpack.c.b16 %v1501, %v1500
    %v1527 = vpack.c.b16 %v1503, %v1502
    %1552 = vmatpush.bf16.msra.mxu0 %v1511
    %1553 = vmatpush.bf16.msra.mxu0 %v1510
    %1554 = vmatpush.bf16.msra.mxu0 %v1509
    %1555 = vmatpush.bf16.msra.mxu0 %v1508
    %1556 = vmatpush.bf16.msra.mxu0 %v1507
    %1557 = vmatpush.bf16.msra.mxu0 %v1506
    %1558 = vmatpush.bf16.msra.mxu0 %v1505
    %1559 = vmatpush.bf16.msra.mxu0 %v1504
    %1560 = vmatmul.bf16.gmra.mxu0 %v1353
    %v1561 = vpop.f32.mrf.mxu0
    %v1562 = vadd.f32 %v1406, %v1561
    %v1563 = vpop.f32.mrf.mxu0
    %1564 = vdwg.mxu0
    %1565 = vmatpush.bf16.msra.mxu0 %v1519
    %1566 = vmatpush.bf16.msra.mxu0 %v1518
    %1567 = vmatpush.bf16.msra.mxu0 %v1517
    %1568 = vmatpush.bf16.msra.mxu0 %v1516
    %1569 = vmatpush.bf16.msra.mxu0 %v1515
    %1570 = vmatpush.bf16.msra.mxu0 %v1514
    %1571 = vmatpush.bf16.msra.mxu0 %v1513
    %1572 = vmatpush.bf16.msra.mxu0 %v1512
    %1573 = vmatmul.bf16.gmra.mxu0 %v1354
    %v1574 = vpop.f32.mrf.mxu0
    %v1575 = vadd.f32 %v1562, %v1574
    %v1576 = vpop.f32.mrf.mxu0
    %1577 = vdwg.mxu0
    %1578 = vmatpush.bf16.msra.mxu0 %v1527
    %1579 = vmatpush.bf16.msra.mxu0 %v1526
    %1580 = vmatpush.bf16.msra.mxu0 %v1525
    %1581 = vmatpush.bf16.msra.mxu0 %v1524
    %1582 = vmatpush.bf16.msra.mxu0 %v1523
    %1583 = vmatpush.bf16.msra.mxu0 %v1522
    %1584 = vmatpush.bf16.msra.mxu0 %v1521
    %1585 = vmatpush.bf16.msra.mxu0 %v1520
    %1586 = vmatmul.bf16.gmra.mxu0 %v1355
    %v1587 = vpop.f32.mrf.mxu0
    %v1588 = vadd.f32 %v1575, %v1587
    %v1589 = vpop.f32.mrf.mxu0
    %1590 = vdwg.mxu0
    %v1591 = vmax.f32 %v1588, 0.0
    %v1592 = vpack.c.bf16 %v1591, %v1591
    %v1593 = vld [vmem:[#allocation11] sm:$0xf]
    %v1594 = vld [vmem:[#allocation11 + $0x4] sm:$0xf]
    %v1595 = vld [vmem:[#allocation11 + $0x8] sm:$0xf]
    %v1596 = vld [vmem:[#allocation11 + $0xc] sm:$0xf]
    %v1597 = vld [vmem:[#allocation11 + $0x10] sm:$0xf]
    %v1598 = vld [vmem:[#allocation11 + $0x14] sm:$0xf]
    %v1599 = vld [vmem:[#allocation11 + $0x18] sm:$0xf]
    %v1600 = vld [vmem:[#allocation11 + $0x1c] sm:$0xf]
    %v1601 = vld [vmem:[#allocation11 + $0x20] sm:$0xf]
    %v1602 = vld [vmem:[#allocation11 + $0x24] sm:$0xf]
    %v1603 = vld [vmem:[#allocation11 + $0x28] sm:$0xf]
    %v1604 = vld [vmem:[#allocation11 + $0x2c] sm:$0xf]
    %v1605 = vld [vmem:[#allocation11 + $0x30] sm:$0xf]
    %v1606 = vld [vmem:[#allocation11 + $0x34] sm:$0xf]
    %v1607 = vld [vmem:[#allocation11 + $0x38] sm:$0xf]
    %v1608 = vld [vmem:[#allocation11 + $0x3c] sm:$0xf]
    %v1609 = vld [vmem:[%s7] sm:$0x1]
    %v1611 = vperm.slane %v1609, 0
    %v1629 = vunpack.c.l.b16 %v1593
    %v1630 = vunpack.c.l.b16 %v1594
    %v1631 = vunpack.c.l.b16 %v1595
    %v1632 = vunpack.c.l.b16 %v1596
    %v1633 = vunpack.c.l.b16 %v1597
    %v1634 = vunpack.c.l.b16 %v1598
    %v1635 = vunpack.c.l.b16 %v1599
    %v1636 = vunpack.c.l.b16 %v1600
    %v1637 = vunpack.c.l.b16 %v1601
    %v1638 = vunpack.c.l.b16 %v1602
    %v1639 = vunpack.c.l.b16 %v1603
    %v1640 = vunpack.c.l.b16 %v1604
    %v1641 = vunpack.c.l.b16 %v1605
    %v1642 = vunpack.c.l.b16 %v1606
    %v1643 = vunpack.c.l.b16 %v1607
    %v1644 = vunpack.c.l.b16 %v1608
    %v1645 = vpack.c.b16 %v1630, %v1629
    %v1646 = vpack.c.b16 %v1632, %v1631
    %v1647 = vpack.c.b16 %v1634, %v1633
    %v1648 = vpack.c.b16 %v1636, %v1635
    %v1649 = vpack.c.b16 %v1638, %v1637
    %v1650 = vpack.c.b16 %v1640, %v1639
    %v1651 = vpack.c.b16 %v1642, %v1641
    %v1652 = vpack.c.b16 %v1644, %v1643
    %1661 = vmatpush.bf16.msra.mxu0 %v1652
    %1662 = vmatpush.bf16.msra.mxu0 %v1651
    %1663 = vmatpush.bf16.msra.mxu0 %v1650
    %1664 = vmatpush.bf16.msra.mxu0 %v1649
    %1665 = vmatpush.bf16.msra.mxu0 %v1648
    %1666 = vmatpush.bf16.msra.mxu0 %v1647
    %1667 = vmatpush.bf16.msra.mxu0 %v1646
    %1668 = vmatpush.bf16.msra.mxu0 %v1645
    %1669 = vmatmul.bf16.gmra.mxu0 %v1592
    %v1670 = vpop.f32.mrf.mxu0
    %v1671 = vadd.f32 %v1611, %v1670
    %v1672 = vpop.f32.mrf.mxu0
    %1673 = vdwg.mxu0
    %v1674 = vmax.f32 %v1671, 0.0
    %1675 = vst [vmem:[#allocation13] sm:$0xff] %v1674
    // Predicated region
    $region58: #{tpu_custom_call.1} parent=1 // pred_check
      _
    $region59: #{tpu_custom_call.1} parent=1 // pred_check_branch
      %1677 = sbr.rel (0) target = $region61
    $region60: #{tpu_custom_call.1} parent=1 // pred_region
      %1679 = vsyncadd [#allocation4], 0
      %s1681 = sshll.u32 [#allocation13], 4
      %s1682 = int_to_ptr.vmem [resolvable:$true] %s1681
      %s1683 = sshll.u32 %s8, 4
      %s1684 = int_to_ptr.hbm [resolvable:$true] %s1683
      %1686 = dma.vmem_to_hbm [thread:$0]  %s1682, 128, %s1684, [#allocation4]
    $region61: #{tpu_custom_call.1} parent=1 // pred_fallthru
      _
    // Predicated region
    $region62: #{tpu_custom_call.1} parent=1 // pred_check
      _
    $region63: #{tpu_custom_call.1} parent=1 // pred_check_branch
      %1688 = sbr.rel (0) target = $region65
    $region64: #{tpu_custom_call.1} parent=1 // pred_region
      %1690 = dma.done [#allocation4], 128
    $region65: #{tpu_custom_call.1} parent=1 // pred_fallthru
      _
    %1691 = vsyncpa [#allocation3], 1
    %1692 = vsyncpa [#allocation6], 1
    %1693 = vsyncpa [#allocation9], 1
    %1694 = vsyncpa [#allocation12], 1
    %1695 = vsyncpa [#allocation4], 1

</llo_original>
